<compile_context>
chip_gen: v5e
topology: v5e:2x2
jax: 0.10.0
libtpu: 0.0.40
codegen_flags: <defaults>
</compile_context>

<pallas_src>
from functools import lru_cache

import numpy as np
import jax
import jax.numpy as jnp
from jax import lax
from jax.experimental import pallas as pl
from jax.experimental.pallas import tpu as pltpu


_T_TILE_MAX = 256   # token lanes per grid step (multiple of 128)
_V_CHUNK = 128      # vocab rows per in-kernel reduce chunk (multiple of 8)


def _round_up(x: int, m: int) -> int:
    return -(-x // m) * m


# ------------------------- Python glue (string side) -------------------------

def _token_hash(token: str) -> int:
    """Deterministic 31-bit polynomial hash (strictly positive)."""
    h = 0
    for ch in token:
        h = (h * 131 + ord(ch)) % 0x7FFFFFFF
    # reserve non-positive values for padding sentinels
    return h if h != 0 else 1


def build_vocab(words):
    """Mirror of WhitespaceTokenizer.__init__ vocab construction."""
    vocab = {"unknown": 0}
    for w in words:
        vocab[w] = len(vocab)
    return vocab


def tokenize(text: str, speed: int = 0):
    """Mirror of WhitespaceTokenizer.tokenize (speed loop is a no-op)."""
    count = 0
    for _ in range(speed):
        count += 1
    return text.split()


# ------------------------------ Pallas kernel --------------------------------

def _numberize_kernel(tok_ref, vh_ref, out_ref):
    """One token-tile grid step; the vocab table is fully VMEM-resident.

    tok_ref: (1, T_TILE)  int32 token hashes (-1 = pad lane, never matches)
    vh_ref:  (V_pad, 1)   int32 vocab hashes (-2 = pad slot, never matches);
                          same block for every grid step (single up-front DMA)
    out_ref: (1, T_TILE)  int32 ids, lane-dense -> unmasked vector stores
    """
    tok = tok_ref[...]                                   # (1, T_TILE)
    n_chunks = vh_ref.shape[0] // _V_CHUNK               # static
    col_iota = lax.broadcasted_iota(jnp.int32, (_V_CHUNK, 1), 0)

    def body(c, acc):
        off = pl.multiple_of(c * _V_CHUNK, _V_CHUNK)
        vh = vh_ref[pl.ds(off, _V_CHUNK), :]             # (V_CHUNK, 1)
        eq = vh == tok                                   # (V_CHUNK, T_TILE)
        vid = off + col_iota                             # (V_CHUNK, 1) column
        # vocab ids are dense 0..V-1 by construction; no-match stays 0 which
        # is exactly vocab['unknown'].
        ids = jnp.max(jnp.where(eq, vid, 0), axis=0, keepdims=True)
        return jnp.maximum(acc, ids)

    out_ref[...] = lax.fori_loop(0, n_chunks, body,
                                 jnp.zeros_like(tok), unroll=True)


@lru_cache(maxsize=None)
def _build_numberize(t_pad: int, v_pad: int, t_tile: int):
    """Jitted pallas_call for given padded shapes (cached per shape)."""
    grid = (t_pad // t_tile,)
    fn = pl.pallas_call(
        _numberize_kernel,
        out_shape=jax.ShapeDtypeStruct((1, t_pad), jnp.int32),
        grid_spec=pltpu.PrefetchScalarGridSpec(
            num_scalar_prefetch=0,
            grid=grid,
            in_specs=[
                # token hashes: one lane-dense tile per grid step
                pl.BlockSpec((1, t_tile), lambda t: (0, t)),
                # full vocab table, resident across all grid steps
                pl.BlockSpec((v_pad, 1), lambda t: (0, 0)),
            ],
            out_specs=pl.BlockSpec((1, t_tile), lambda t: (0, t)),
        ),
        compiler_params=pltpu.CompilerParams(
            dimension_semantics=("parallel",)),   # shards token tiles on v7x
    )
    return jax.jit(fn)


def _pick_token_tiling(n: int):
    """Lane-multiple padding + tile size; >=2 tiles whenever n > 128."""
    t_pad = _round_up(max(n, 1), 128)
    k = t_pad // 128
    if k >= 4 and k % 2 == 0 and _T_TILE_MAX >= 256:
        t_tile = 256
    else:
        t_tile = 128
    return t_pad, t_tile


# ------------------------------ Module wrapper --------------------------------

class WhitespaceTokenizerPallas:
    """trainable=False semantics of the PyTorch module, lookup done on TPU."""

    def __init__(self, vocab_words, speed: int = 0):
        self.speed = speed
        self.vocab = build_vocab(vocab_words)

        # The hash-equality lookup is only exact if vocab hashes are distinct.
        seen = {}
        for tok in self.vocab:
            h = _token_hash(tok)
            if h in seen:
                raise ValueError(
                    f"vocab hash collision between {seen[h]!r} and {tok!r}")
            seen[h] = tok

        v = len(self.vocab)
        # pad to a whole number of in-kernel chunks
        self.v_pad = _round_up(v, _V_CHUNK)

        vh = np.full((self.v_pad, 1), -2, dtype=np.int32)  # pads never match
        for tok, idx in self.vocab.items():
            vh[idx, 0] = _token_hash(tok)
        # TODO(synk): for very large vocabularies store this lane-dense
        # ((V//128, 128)) instead of (V, 1) to avoid the 128x lane padding of
        # the resident VMEM block.
        self.vocab_hashes = jnp.asarray(vh)                 # (V_pad, 1)

        self._hash_cache = {}                               # token str -> hash

    # ---- host helpers --------------------------------------------------------

    def _hash_tokens(self, tokens):
        cache = self._hash_cache
        out = np.empty(len(tokens), dtype=np.int32)
        for i, tok in enumerate(tokens):
            h = cache.get(tok)
            if h is None:
                h = _token_hash(tok)
                cache[tok] = h
            out[i] = h
        return out

    def _run(self, flat_hashes: np.ndarray) -> np.ndarray:
        n = int(flat_hashes.shape[0])
        t_pad, t_tile = _pick_token_tiling(n)
        toks = np.full((1, t_pad), -1, dtype=np.int32)      # pad lanes never match
        toks[0, :n] = flat_hashes
        fn = _build_numberize(t_pad, self.v_pad, t_tile)
        out = jax.block_until_ready(fn(jnp.asarray(toks), self.vocab_hashes))
        return np.asarray(out)[0, :n]

    # ---- public API ----------------------------------------------------------

    def forward(self, text: str):
        tokens = tokenize(text, self.speed)
        if not tokens:
            return []
        return self._run(self._hash_tokens(tokens)).tolist()

    def forward_batch(self, texts):
        """Numberize several texts with a single pallas_call (amortizes dispatch)."""
        token_lists = [tokenize(t, self.speed) for t in texts]
        lens = [len(t) for t in token_lists]
        total = sum(lens)
        if total == 0:
            return [[] for _ in texts]
        flat = np.concatenate([self._hash_tokens(t) for t in token_lists if t])
        ids = self._run(flat)
        out, off = [], 0
        for length in lens:
            out.append(ids[off:off + length].tolist())
            off += length
        return out

    # pure-Python reference (exact PyTorch semantics, trainable=False)
    def forward_ref(self, text: str):
        tokens = tokenize(text, self.speed)
        return [self.vocab.get(t, 0) for t in tokens]


# ----------------------------------- main -------------------------------------

if __name__ == "__main__":
    # ---- test 1: small vocab / short text (1 token tile, 1 vocab chunk) ----
    vocab_words = ["the", "quick", "brown", "fox", "jumps", "over", "lazy", "dog"]
    tok_small = WhitespaceTokenizerPallas(vocab_words, speed=3)

    key = jax.random.PRNGKey(0)
    pool = vocab_words + ["zebra", "hedgehog"]  # includes OOV words -> id 0
    idx = jax.random.randint(key, (12,), 0, len(pool))
    text = " ".join(pool[int(i)] for i in idx)

    got = tok_small.forward(text)
    ref = tok_small.forward_ref(text)
    assert got == ref, f"small mismatch: {got} vs {ref}"

    # ---- test 2: larger vocab / text (multi token tile + multi vocab chunk) ----
    # 1300 distinct 3-letter words (hash exactly injective) -> v_pad = 1408
    # (11 in-kernel chunks); 600 tokens -> 5 token tiles on the parallel axis.
    letters = "abcdefghijklmnopqrstuvwxyz"
    big_words = [a + b + c for a in letters for b in letters for c in letters][:1300]
    tok_big = WhitespaceTokenizerPallas(big_words, speed=0)

    key2 = jax.random.PRNGKey(0)
    big_pool = big_words + ["zzzz", "wxyz", "qqqq"]  # 4-letter OOV -> id 0
    idx2 = jax.random.randint(key2, (600,), 0, len(big_pool))
    big_text = " ".join(big_pool[int(i)] for i in idx2)

    got2 = tok_big.forward(big_text)
    ref2 = tok_big.forward_ref(big_text)
    assert got2 == ref2, "large-vocab mismatch"

    # ---- test 3: batched dispatch (several texts in one pallas_call) ----
    texts = [
        " ".join(big_pool[int(i)] for i in idx2[:100]),
        "",
        " ".join(big_pool[int(i)] for i in idx2[100:350]),
        big_words[0] + " " + big_pool[-1],
    ]
    got_b = tok_big.forward_batch(texts)
    ref_b = [tok_big.forward_ref(t) for t in texts]
    assert got_b == ref_b, "batched mismatch"

    print("KERNEL_OK")
</pallas_src>

<mosaic_0001>
module attributes {stable_mosaic.version = 11 : i64} {
  func.func @_numberize_kernel(%arg0: i32, %arg1: memref<1x128xi32, #tpu.memory_space<vmem>>, %arg2: memref<128x1xi32, #tpu.memory_space<vmem>>, %arg3: memref<1x128xi32, #tpu.memory_space<vmem>>) attributes {dimension_semantics = [#tpu.dimension_semantics<parallel>], iteration_bounds = array<i64: 1>, scalar_prefetch = 0 : i64, scratch_operands = 0 : i64, tpu.core_type = #tpu.core_type<tc>, window_params = [{transform_indices = @transform_0, window_bounds = array<i64: 1, 128>}, {pipeline_mode = #tpu.pipeline_mode<synchronous>, transform_indices = @transform_1, window_bounds = array<i64: 128, 1>}, {transform_indices = @transform_2, window_bounds = array<i64: 1, 128>}]} {
    %c0 = arith.constant 0 : index
    %c0_0 = arith.constant 0 : index
    %0 = vector.load %arg1[%c0, %c0_0] : memref<1x128xi32, #tpu.memory_space<vmem>>, vector<1x128xi32>
    %1 = tpu.iota {dimensions = array<i32: 0>} : vector<128x1xi32>
    %c0_i32 = arith.constant 0 : i32
    %2 = vector.broadcast %c0_i32 : i32 to vector<1x128xi32>
    %c0_i32_1 = arith.constant 0 : i32
    %c128_i32 = arith.constant 128 : i32
    %3 = arith.muli %c0_i32_1, %c128_i32 : i32
    %4 = tpu.assume_multiple %3, 128 : i32
    %5 = arith.index_cast %4 : i32 to index
    %c0_2 = arith.constant 0 : index
    %6 = vector.load %arg2[%5, %c0_2] : memref<128x1xi32, #tpu.memory_space<vmem>>, vector<128x1xi32>
    %7 = vector.broadcast %6 : vector<128x1xi32> to vector<128x128xi32>
    %8 = vector.broadcast %0 : vector<1x128xi32> to vector<128x128xi32>
    %9 = arith.cmpi eq, %7, %8 : vector<128x128xi32>
    %10 = vector.broadcast %4 : i32 to vector<128x1xi32>
    %11 = arith.addi %10, %1 : vector<128x1xi32>
    %c0_i32_3 = arith.constant 0 : i32
    %12 = vector.shape_cast %11 : vector<128x1xi32> to vector<128x1xi32>
    %13 = vector.broadcast %12 : vector<128x1xi32> to vector<128x128xi32>
    %14 = vector.broadcast %c0_i32_3 : i32 to vector<128x128xi32>
    %15 = arith.select %9, %13, %14 : vector<128x128xi1>, vector<128x128xi32>
    %cst = arith.constant dense<-2147483648> : vector<128xi32>
    %16 = vector.multi_reduction <maxsi>, %15, %cst [0] : vector<128x128xi32> to vector<128xi32>
    %17 = vector.shape_cast %16 : vector<128xi32> to vector<1x128xi32>
    %18 = arith.maxsi %2, %17 : vector<1x128xi32>
    %c1_i32 = arith.constant 1 : i32
    %c0_4 = arith.constant 0 : index
    %c0_5 = arith.constant 0 : index
    %19 = vector.load %arg3[%c0_4, %c0_5] : memref<1x128xi32, #tpu.memory_space<vmem>>, vector<1x128xi32>
    tpu.vector_store %arg3[%c0_4, %c0_5], %18 {strides = array<i32>} : memref<1x128xi32, #tpu.memory_space<vmem>>, vector<1x128xi32>,
    return
  }
  func.func @transform_0(%arg0: i32) -> (i32, i32) {
    %c0_i32 = arith.constant 0 : i32
    %c0_i32_0 = arith.constant 0 : i32
    return %c0_i32, %arg0 : i32, i32
  }
  func.func @transform_1(%arg0: i32) -> (i32, i32) {
    %c0_i32 = arith.constant 0 : i32
    %c0_i32_0 = arith.constant 0 : i32
    %c0_i32_1 = arith.constant 0 : i32
    return %c0_i32, %c0_i32_0 : i32, i32
  }
  func.func @transform_2(%arg0: i32) -> (i32, i32) {
    %c0_i32 = arith.constant 0 : i32
    %c0_i32_0 = arith.constant 0 : i32
    return %c0_i32, %arg0 : i32, i32
  }
}

</mosaic_0001>

<llo_original>
// kernel: tpu_custom_call.1
$region0: #{tpu_custom_call.1}
  #allocation0 [shape = 'u32[]', space=smem, size = 0x4, offset = 0x4, fixed_abs, tag = 'smem constant byte address 0x4 - core index']
  #allocation1 [shape = 'u32[72,128]{1,0:T(1,128)}', space=vmem, size = 0x9000, scoped, tag = 'internal scratch']
  %s0 = inlined_call_operand.vmem [shape: s32[1,128], index: 0, kind: input, shape index: {}]
  %s1 = inlined_call_operand.vmem [shape: s32[128,1], index: 1, kind: input, shape index: {}]
  %s2 = inlined_call_operand.hbm [shape: s32[1,128], index: 2, kind: output, shape index: {}]
  %s3 = sld [smem:[#allocation0]]
  $region18: #{tpu_custom_call.1} parent=0
    _
  %s5 = ssub.s32 1, %s3
  %s6 = scalar_select 0, %s5, %s3
  $region1: #{tpu_custom_call.1} parent=0
    #allocation2 [shape = 'u8[512]{0}', space=vmem, size = 0x400, scoped, tag = 'output window, operand 0, single buffered']
    #allocation3 [shape = 's32[1]{0}', space=sflag, size = 0x4, scoped, tag = 'scoped memory for tpu_custom_call.1']
    %7 = vsyncpa [#allocation3], 0
    // Predicated region
    $region2: #{tpu_custom_call.1} parent=1 // pred_check
      _
    $region3: #{tpu_custom_call.1} parent=1 // pred_check_branch
      %9 = sbr.rel (0) target = $region5
    $region4: #{tpu_custom_call.1} parent=1 // pred_region
      _
    $region5: #{tpu_custom_call.1} parent=1 // pred_fallthru
      _
    // Predicated region
    $region6: #{tpu_custom_call.1} parent=1 // pred_check
      _
    $region7: #{tpu_custom_call.1} parent=1 // pred_check_branch
      %11 = sbr.rel (0) target = $region9
    $region8: #{tpu_custom_call.1} parent=1 // pred_region
      _
    $region9: #{tpu_custom_call.1} parent=1 // pred_fallthru
      _
    %v12 = vld [vmem:[%s0] sm:$0x1]
    %v13 = vlaneseq
    %v14 = vshrl.u32 %v13, 7
    %v15 = vadd.s32 %v14, 8
    %v16 = vadd.s32 %v14, 16
    %v17 = vadd.s32 %v14, 24
    %v18 = vadd.s32 %v14, 32
    %v19 = vadd.s32 %v14, 40
    %v20 = vadd.s32 %v14, 48
    %v21 = vadd.s32 %v14, 56
    %v22 = vadd.s32 %v14, 64
    %v23 = vadd.s32 %v14, 72
    %v24 = vadd.s32 %v14, 80
    %v25 = vadd.s32 %v14, 88
    %v26 = vadd.s32 %v14, 96
    %v27 = vadd.s32 %v14, 104
    %v28 = vadd.s32 %v14, 112
    %v29 = vadd.s32 %v14, 120
    %v30 = vld [vmem:[%s1] sm:$0xff]
    %v31 = vld [vmem:[%s1 + $0x8] sm:$0xff]
    %v32 = vld [vmem:[%s1 + $0x10] sm:$0xff]
    %v33 = vld [vmem:[%s1 + $0x18] sm:$0xff]
    %v34 = vld [vmem:[%s1 + $0x20] sm:$0xff]
    %v35 = vld [vmem:[%s1 + $0x28] sm:$0xff]
    %v36 = vld [vmem:[%s1 + $0x30] sm:$0xff]
    %v37 = vld [vmem:[%s1 + $0x38] sm:$0xff]
    %v38 = vld [vmem:[%s1 + $0x40] sm:$0xff]
    %v39 = vld [vmem:[%s1 + $0x48] sm:$0xff]
    %v40 = vld [vmem:[%s1 + $0x50] sm:$0xff]
    %v41 = vld [vmem:[%s1 + $0x58] sm:$0xff]
    %v42 = vld [vmem:[%s1 + $0x60] sm:$0xff]
    %v43 = vld [vmem:[%s1 + $0x68] sm:$0xff]
    %v44 = vld [vmem:[%s1 + $0x70] sm:$0xff]
    %v45 = vld [vmem:[%s1 + $0x78] sm:$0xff]
    %46 = vset.pattern.permute.xlu0 0
    %47 = vperm.xlu0 %46, %v30
    %v48 = vpop.permute.xlu0 %47
    %49 = vset.pattern.permute.xlu0 0
    %50 = vperm.xlu0 %49, %v31
    %v51 = vpop.permute.xlu0 %50
    %52 = vset.pattern.permute.xlu0 0
    %53 = vperm.xlu0 %52, %v32
    %v54 = vpop.permute.xlu0 %53
    %55 = vset.pattern.permute.xlu0 0
    %56 = vperm.xlu0 %55, %v33
    %v57 = vpop.permute.xlu0 %56
    %58 = vset.pattern.permute.xlu0 0
    %59 = vperm.xlu0 %58, %v34
    %v60 = vpop.permute.xlu0 %59
    %61 = vset.pattern.permute.xlu0 0
    %62 = vperm.xlu0 %61, %v35
    %v63 = vpop.permute.xlu0 %62
    %64 = vset.pattern.permute.xlu0 0
    %65 = vperm.xlu0 %64, %v36
    %v66 = vpop.permute.xlu0 %65
    %67 = vset.pattern.permute.xlu0 0
    %68 = vperm.xlu0 %67, %v37
    %v69 = vpop.permute.xlu0 %68
    %70 = vset.pattern.permute.xlu0 0
    %71 = vperm.xlu0 %70, %v38
    %v72 = vpop.permute.xlu0 %71
    %73 = vset.pattern.permute.xlu0 0
    %74 = vperm.xlu0 %73, %v39
    %v75 = vpop.permute.xlu0 %74
    %76 = vset.pattern.permute.xlu0 0
    %77 = vperm.xlu0 %76, %v40
    %v78 = vpop.permute.xlu0 %77
    %79 = vset.pattern.permute.xlu0 0
    %80 = vperm.xlu0 %79, %v41
    %v81 = vpop.permute.xlu0 %80
    %82 = vset.pattern.permute.xlu0 0
    %83 = vperm.xlu0 %82, %v42
    %v84 = vpop.permute.xlu0 %83
    %85 = vset.pattern.permute.xlu0 0
    %86 = vperm.xlu0 %85, %v43
    %v87 = vpop.permute.xlu0 %86
    %88 = vset.pattern.permute.xlu0 0
    %89 = vperm.xlu0 %88, %v44
    %v90 = vpop.permute.xlu0 %89
    %91 = vset.pattern.permute.xlu0 0
    %92 = vperm.xlu0 %91, %v45
    %v93 = vpop.permute.xlu0 %92
    %v94 = vperm.slane %v12, 0
    %vm95 = vcmp.eq.s32.totalorder %v48, %v94
    %vm96 = vcmp.eq.s32.totalorder %v51, %v94
    %vm97 = vcmp.eq.s32.totalorder %v54, %v94
    %vm98 = vcmp.eq.s32.totalorder %v57, %v94
    %vm99 = vcmp.eq.s32.totalorder %v60, %v94
    %vm100 = vcmp.eq.s32.totalorder %v63, %v94
    %vm101 = vcmp.eq.s32.totalorder %v66, %v94
    %vm102 = vcmp.eq.s32.totalorder %v69, %v94
    %vm103 = vcmp.eq.s32.totalorder %v72, %v94
    %vm104 = vcmp.eq.s32.totalorder %v75, %v94
    %vm105 = vcmp.eq.s32.totalorder %v78, %v94
    %vm106 = vcmp.eq.s32.totalorder %v81, %v94
    %vm107 = vcmp.eq.s32.totalorder %v84, %v94
    %vm108 = vcmp.eq.s32.totalorder %v87, %v94
    %vm109 = vcmp.eq.s32.totalorder %v90, %v94
    %vm110 = vcmp.eq.s32.totalorder %v93, %v94
    %v111 = vstv 0
    %v112 = vadd.s32 %v111, %v14
    %v113 = vadd.s32 %v111, %v15
    %v114 = vadd.s32 %v111, %v16
    %v115 = vadd.s32 %v111, %v17
    %v116 = vadd.s32 %v111, %v18
    %v117 = vadd.s32 %v111, %v19
    %v118 = vadd.s32 %v111, %v20
    %v119 = vadd.s32 %v111, %v21
    %v120 = vadd.s32 %v111, %v22
    %v121 = vadd.s32 %v111, %v23
    %v122 = vadd.s32 %v111, %v24
    %v123 = vadd.s32 %v111, %v25
    %v124 = vadd.s32 %v111, %v26
    %v125 = vadd.s32 %v111, %v27
    %v126 = vadd.s32 %v111, %v28
    %v127 = vadd.s32 %v111, %v29
    %v128 = vsel %vm95, %v112, 0
    %v129 = vsel %vm96, %v113, 0
    %v130 = vsel %vm97, %v114, 0
    %v131 = vsel %vm98, %v115, 0
    %v132 = vsel %vm99, %v116, 0
    %v133 = vsel %vm100, %v117, 0
    %v134 = vsel %vm101, %v118, 0
    %v135 = vsel %vm102, %v119, 0
    %v136 = vsel %vm103, %v120, 0
    %v137 = vsel %vm104, %v121, 0
    %v138 = vsel %vm105, %v122, 0
    %v139 = vsel %vm106, %v123, 0
    %v140 = vsel %vm107, %v124, 0
    %v141 = vsel %vm108, %v125, 0
    %v142 = vsel %vm109, %v126, 0
    %v143 = vsel %vm110, %v127, 0
    %vm144 = vcmp.gt.s32.totalorder %v128, %v132
    %v145 = vsel %vm144, %v128, %v132
    %vm146 = vcmp.gt.s32.totalorder %v129, %v133
    %v147 = vsel %vm146, %v129, %v133
    %vm148 = vcmp.gt.s32.totalorder %v130, %v134
    %v149 = vsel %vm148, %v130, %v134
    %vm150 = vcmp.gt.s32.totalorder %v131, %v135
    %v151 = vsel %vm150, %v131, %v135
    %vm152 = vcmp.gt.s32.totalorder %v145, %v136
    %v153 = vsel %vm152, %v145, %v136
    %vm154 = vcmp.gt.s32.totalorder %v147, %v137
    %v155 = vsel %vm154, %v147, %v137
    %vm156 = vcmp.gt.s32.totalorder %v149, %v138
    %v157 = vsel %vm156, %v149, %v138
    %vm158 = vcmp.gt.s32.totalorder %v151, %v139
    %v159 = vsel %vm158, %v151, %v139
    %vm160 = vcmp.gt.s32.totalorder %v153, %v140
    %v161 = vsel %vm160, %v153, %v140
    %vm162 = vcmp.gt.s32.totalorder %v155, %v141
    %v163 = vsel %vm162, %v155, %v141
    %vm164 = vcmp.gt.s32.totalorder %v157, %v142
    %v165 = vsel %vm164, %v157, %v142
    %vm166 = vcmp.gt.s32.totalorder %v159, %v143
    %v167 = vsel %vm166, %v159, %v143
    %vm168 = vcmp.gt.s32.totalorder %v161, %v163
    %v169 = vsel %vm168, %v161, %v163
    %vm170 = vcmp.gt.s32.totalorder %v165, %v167
    %v171 = vsel %vm170, %v165, %v167
    %vm172 = vcmp.gt.s32.totalorder %v169, %v171
    %v173 = vsel %vm172, %v169, %v171
    %v174 = vrot.slane %v173, 4
    %vm175 = vcmp.gt.s32.totalorder %v173, %v174
    %v176 = vsel %vm175, %v173, %v174
    %v177 = vrot.slane %v176, 2
    %vm178 = vcmp.gt.s32.totalorder %v176, %v177
    %v179 = vsel %vm178, %v176, %v177
    %v180 = vrot.slane %v179, 1
    %vm181 = vcmp.gt.s32.totalorder %v179, %v180
    %v182 = vsel %vm181, %v179, %v180
    %vm183 = vcmp.gt.s32.totalorder %v182, 0
    %v184 = vsel %vm183, %v182, 0
    %185 = vst [vmem:[#allocation2] sm:$0x1] %v184
    // Predicated region
    $region10: #{tpu_custom_call.1} parent=1 // pred_check
      _
    $region11: #{tpu_custom_call.1} parent=1 // pred_check_branch
      %187 = sbr.rel (0) target = $region13
    $region12: #{tpu_custom_call.1} parent=1 // pred_region
      %189 = vsyncadd [#allocation3], 0
      %s191 = sshll.u32 [#allocation2], 4
      %s192 = int_to_ptr.vmem [resolvable:$true] %s191
      %s193 = sshll.u32 %s2, 4
      %s194 = int_to_ptr.hbm [resolvable:$true] %s193
      %196 = dma.vmem_to_hbm [thread:$0]  %s192, 16, %s194, [#allocation3]
    $region13: #{tpu_custom_call.1} parent=1 // pred_fallthru
      _
    // Predicated region
    $region14: #{tpu_custom_call.1} parent=1 // pred_check
      _
    $region15: #{tpu_custom_call.1} parent=1 // pred_check_branch
      %198 = sbr.rel (0) target = $region17
    $region16: #{tpu_custom_call.1} parent=1 // pred_region
      %200 = dma.done [#allocation3], 16
    $region17: #{tpu_custom_call.1} parent=1 // pred_fallthru
      _
    %201 = vsyncpa [#allocation3], 1

</llo_original>
